<compile_context>
chip_gen: v5e
topology: v5e:2x2
jax: 0.10.0
libtpu: 0.0.40
codegen_flags: <defaults>
</compile_context>

<pallas_src>
import jax
import jax.numpy as jnp
from jax.experimental import pallas as pl
from jax.experimental.pallas import tpu as pltpu

K = 3          # kernel size
PAD = K - 1    # full-conv halo on each side


def convt_kernel(x_ref, w_ref, o_ref):
    # x_ref: (N, C, H, W)       VMEM  -- whole batch
    # w_ref: (K*K, N*C, 1, 1)   VMEM  -- flipped (correlation) taps per fused channel
    # o_ref: (N, C, Ho, Wo)     VMEM
    N, C, H, W = x_ref.shape
    NC = N * C
    Ho, Wo = o_ref.shape[2], o_ref.shape[3]

    # Fuse batch and channel into one leading dim (minor dims untouched -> free).
    x = x_ref[...].reshape(NC, H, W).astype(jnp.float32)

    # Build the zero halo in registers (no VMEM scratch round-trip).
    zrow = jnp.zeros((NC, PAD, W), jnp.float32)
    xp = jnp.concatenate([zrow, x, zrow], axis=1)            # (NC, H+2*PAD, W)
    zcol = jnp.zeros((NC, H + 2 * PAD, PAD), jnp.float32)
    xp = jnp.concatenate([zcol, xp, zcol], axis=2)           # (NC, Hp, Wp)

    # One load for all tap weights; each w[t] is an (NC, 1, 1) vector that
    # broadcasts over the minor (sublane, lane) dims of the output slab.
    w = w_ref[...]                                           # (K*K, NC, 1, 1)

    # 9-tap correlation on the full (NC, Ho, Wo) slab, f32 accumulation.
    acc = jnp.zeros((NC, Ho, Wo), jnp.float32)
    for ki in range(K):            # static: K == 3, fully unrolled
        for kj in range(K):
            acc = acc + xp[:, ki:ki + Ho, kj:kj + Wo] * w[ki * K + kj]

    o_ref[...] = acc.reshape(N, C, Ho, Wo).astype(o_ref.dtype)


def conv_transpose2d_depthwise(x, w):
    """x: (N, C, H, W); w: (C, 1, K, K) PyTorch ConvTranspose2d weight (groups=C)."""
    N, C, H, W = x.shape
    Ho, Wo = H + K - 1, W + K - 1

    # stride-1 / pad-0 transposed conv == correlation of the zero-padded input
    # with the spatially flipped kernel.  Taps are pre-shaped (K*K, N*C, 1, 1)
    # (fused index nc = n*C + c) so the in-kernel tap multiply is a plain
    # minor-dim broadcast over the fused-channel slab.
    w_taps = w[:, 0, ::-1, ::-1].reshape(C, K * K).T          # (K*K, C)
    w_taps = jnp.tile(w_taps, (1, N))                         # (K*K, N*C)
    w_taps = w_taps.reshape(K * K, N * C, 1, 1).astype(jnp.float32)

    flops = 2 * N * C * Ho * Wo * K * K
    bytes_accessed = (x.size + w_taps.size + N * C * Ho * Wo) * 4

    return pl.pallas_call(
        convt_kernel,
        out_shape=jax.ShapeDtypeStruct((N, C, Ho, Wo), x.dtype),
        in_specs=[
            pl.BlockSpec(memory_space=pltpu.MemorySpace.VMEM),
            pl.BlockSpec(memory_space=pltpu.MemorySpace.VMEM),
        ],
        out_specs=pl.BlockSpec(memory_space=pltpu.MemorySpace.VMEM),
        cost_estimate=pl.CostEstimate(
            flops=flops, transcendentals=0, bytes_accessed=bytes_accessed),
    )(x, w_taps)


if __name__ == "__main__":
    # Fixed weights exactly as in the PyTorch module:
    # weight shape (in_channels=2, out_channels/groups=1, 3, 3); ch0 = 1.0, ch1 = 2.0.
    weight = jnp.stack([
        jnp.full((1, K, K), 1.0, dtype=jnp.float32),
        jnp.full((1, K, K), 2.0, dtype=jnp.float32),
    ], axis=0)  # (2, 1, 3, 3)

    # Small deterministic input consistent with the module: N=2, C=2, H=W=16.
    key = jax.random.PRNGKey(0)
    x = jax.random.normal(key, (2, 2, 16, 16), dtype=jnp.float32)

    out = conv_transpose2d_depthwise(x, weight)
    out = jax.block_until_ready(out)
    assert out.shape == (2, 2, 18, 18), out.shape

    # Independent reference: ConvTranspose2d == correlation with flipped kernel,
    # via lax.conv_general_dilated with feature_group_count = groups.
    rhs = weight[:, :, ::-1, ::-1]  # (O=2, I/g=1, 3, 3)
    ref = jax.lax.conv_general_dilated(
        x, rhs, window_strides=(1, 1), padding=((2, 2), (2, 2)),
        dimension_numbers=("NCHW", "OIHW", "NCHW"), feature_group_count=2)
    assert jnp.allclose(out, ref, atol=1e-5, rtol=1e-5)

    print("KERNEL_OK")
</pallas_src>

<mosaic_0001>
module attributes {stable_mosaic.version = 11 : i64} {
  func.func @convt_kernel(%arg0: memref<2x2x16x16xf32, #tpu.memory_space<vmem>>, %arg1: memref<9x4x1x1xf32, #tpu.memory_space<vmem>>, %arg2: memref<2x2x18x18xf32, #tpu.memory_space<vmem>>) attributes {dimension_semantics = [], scalar_prefetch = 0 : i64, scratch_operands = 0 : i64, tpu.core_type = #tpu.core_type<tc>} {
    %c0 = arith.constant 0 : index
    %c0_0 = arith.constant 0 : index
    %c0_1 = arith.constant 0 : index
    %c0_2 = arith.constant 0 : index
    %0 = vector.load %arg0[%c0, %c0_0, %c0_1, %c0_2] : memref<2x2x16x16xf32, #tpu.memory_space<vmem>>, vector<2x2x16x16xf32>
    %1 = vector.shape_cast %0 : vector<2x2x16x16xf32> to vector<4x16x16xf32>
    %cst = arith.constant 0.000000e+00 : f32
    %2 = vector.broadcast %cst : f32 to vector<4x2x16xf32>
    %3 = tpu.concatenate %2, %1, %2 in 1 : vector<4x2x16xf32>, vector<4x16x16xf32>, vector<4x2x16xf32> -> vector<4x20x16xf32>
    %cst_3 = arith.constant 0.000000e+00 : f32
    %4 = vector.broadcast %cst_3 : f32 to vector<4x20x2xf32>
    %5 = tpu.concatenate %4, %3, %4 in 2 : vector<4x20x2xf32>, vector<4x20x16xf32>, vector<4x20x2xf32> -> vector<4x20x20xf32>
    %c0_4 = arith.constant 0 : index
    %c0_5 = arith.constant 0 : index
    %c0_6 = arith.constant 0 : index
    %c0_7 = arith.constant 0 : index
    %6 = vector.load %arg1[%c0_4, %c0_5, %c0_6, %c0_7] : memref<9x4x1x1xf32, #tpu.memory_space<vmem>>, vector<9x4x1x1xf32>
    %cst_8 = arith.constant 0.000000e+00 : f32
    %7 = vector.broadcast %cst_8 : f32 to vector<4x18x18xf32>
    %8 = vector.extract_strided_slice %5 {offsets = [0, 0, 0], sizes = [4, 18, 18], strides = [1, 1, 1]} : vector<4x20x20xf32> to vector<4x18x18xf32>
    %9 = vector.extract_strided_slice %6 {offsets = [0, 0, 0, 0], sizes = [1, 4, 1, 1], strides = [1, 1, 1, 1]} : vector<9x4x1x1xf32> to vector<1x4x1x1xf32>
    %10 = vector.shape_cast %9 : vector<1x4x1x1xf32> to vector<4x1x1xf32>
    %11 = vector.broadcast %10 : vector<4x1x1xf32> to vector<4x18x18xf32>
    %12 = arith.mulf %8, %11 : vector<4x18x18xf32>
    %13 = arith.addf %7, %12 : vector<4x18x18xf32>
    %14 = vector.extract_strided_slice %5 {offsets = [0, 0, 1], sizes = [4, 18, 18], strides = [1, 1, 1]} : vector<4x20x20xf32> to vector<4x18x18xf32>
    %15 = vector.extract_strided_slice %6 {offsets = [1, 0, 0, 0], sizes = [1, 4, 1, 1], strides = [1, 1, 1, 1]} : vector<9x4x1x1xf32> to vector<1x4x1x1xf32>
    %16 = vector.shape_cast %15 : vector<1x4x1x1xf32> to vector<4x1x1xf32>
    %17 = vector.broadcast %16 : vector<4x1x1xf32> to vector<4x18x18xf32>
    %18 = arith.mulf %14, %17 : vector<4x18x18xf32>
    %19 = arith.addf %13, %18 : vector<4x18x18xf32>
    %20 = vector.extract_strided_slice %5 {offsets = [0, 0, 2], sizes = [4, 18, 18], strides = [1, 1, 1]} : vector<4x20x20xf32> to vector<4x18x18xf32>
    %21 = vector.extract_strided_slice %6 {offsets = [2, 0, 0, 0], sizes = [1, 4, 1, 1], strides = [1, 1, 1, 1]} : vector<9x4x1x1xf32> to vector<1x4x1x1xf32>
    %22 = vector.shape_cast %21 : vector<1x4x1x1xf32> to vector<4x1x1xf32>
    %23 = vector.broadcast %22 : vector<4x1x1xf32> to vector<4x18x18xf32>
    %24 = arith.mulf %20, %23 : vector<4x18x18xf32>
    %25 = arith.addf %19, %24 : vector<4x18x18xf32>
    %26 = vector.extract_strided_slice %5 {offsets = [0, 1, 0], sizes = [4, 18, 18], strides = [1, 1, 1]} : vector<4x20x20xf32> to vector<4x18x18xf32>
    %27 = vector.extract_strided_slice %6 {offsets = [3, 0, 0, 0], sizes = [1, 4, 1, 1], strides = [1, 1, 1, 1]} : vector<9x4x1x1xf32> to vector<1x4x1x1xf32>
    %28 = vector.shape_cast %27 : vector<1x4x1x1xf32> to vector<4x1x1xf32>
    %29 = vector.broadcast %28 : vector<4x1x1xf32> to vector<4x18x18xf32>
    %30 = arith.mulf %26, %29 : vector<4x18x18xf32>
    %31 = arith.addf %25, %30 : vector<4x18x18xf32>
    %32 = vector.extract_strided_slice %5 {offsets = [0, 1, 1], sizes = [4, 18, 18], strides = [1, 1, 1]} : vector<4x20x20xf32> to vector<4x18x18xf32>
    %33 = vector.extract_strided_slice %6 {offsets = [4, 0, 0, 0], sizes = [1, 4, 1, 1], strides = [1, 1, 1, 1]} : vector<9x4x1x1xf32> to vector<1x4x1x1xf32>
    %34 = vector.shape_cast %33 : vector<1x4x1x1xf32> to vector<4x1x1xf32>
    %35 = vector.broadcast %34 : vector<4x1x1xf32> to vector<4x18x18xf32>
    %36 = arith.mulf %32, %35 : vector<4x18x18xf32>
    %37 = arith.addf %31, %36 : vector<4x18x18xf32>
    %38 = vector.extract_strided_slice %5 {offsets = [0, 1, 2], sizes = [4, 18, 18], strides = [1, 1, 1]} : vector<4x20x20xf32> to vector<4x18x18xf32>
    %39 = vector.extract_strided_slice %6 {offsets = [5, 0, 0, 0], sizes = [1, 4, 1, 1], strides = [1, 1, 1, 1]} : vector<9x4x1x1xf32> to vector<1x4x1x1xf32>
    %40 = vector.shape_cast %39 : vector<1x4x1x1xf32> to vector<4x1x1xf32>
    %41 = vector.broadcast %40 : vector<4x1x1xf32> to vector<4x18x18xf32>
    %42 = arith.mulf %38, %41 : vector<4x18x18xf32>
    %43 = arith.addf %37, %42 : vector<4x18x18xf32>
    %44 = vector.extract_strided_slice %5 {offsets = [0, 2, 0], sizes = [4, 18, 18], strides = [1, 1, 1]} : vector<4x20x20xf32> to vector<4x18x18xf32>
    %45 = vector.extract_strided_slice %6 {offsets = [6, 0, 0, 0], sizes = [1, 4, 1, 1], strides = [1, 1, 1, 1]} : vector<9x4x1x1xf32> to vector<1x4x1x1xf32>
    %46 = vector.shape_cast %45 : vector<1x4x1x1xf32> to vector<4x1x1xf32>
    %47 = vector.broadcast %46 : vector<4x1x1xf32> to vector<4x18x18xf32>
    %48 = arith.mulf %44, %47 : vector<4x18x18xf32>
    %49 = arith.addf %43, %48 : vector<4x18x18xf32>
    %50 = vector.extract_strided_slice %5 {offsets = [0, 2, 1], sizes = [4, 18, 18], strides = [1, 1, 1]} : vector<4x20x20xf32> to vector<4x18x18xf32>
    %51 = vector.extract_strided_slice %6 {offsets = [7, 0, 0, 0], sizes = [1, 4, 1, 1], strides = [1, 1, 1, 1]} : vector<9x4x1x1xf32> to vector<1x4x1x1xf32>
    %52 = vector.shape_cast %51 : vector<1x4x1x1xf32> to vector<4x1x1xf32>
    %53 = vector.broadcast %52 : vector<4x1x1xf32> to vector<4x18x18xf32>
    %54 = arith.mulf %50, %53 : vector<4x18x18xf32>
    %55 = arith.addf %49, %54 : vector<4x18x18xf32>
    %56 = vector.extract_strided_slice %5 {offsets = [0, 2, 2], sizes = [4, 18, 18], strides = [1, 1, 1]} : vector<4x20x20xf32> to vector<4x18x18xf32>
    %57 = vector.extract_strided_slice %6 {offsets = [8, 0, 0, 0], sizes = [1, 4, 1, 1], strides = [1, 1, 1, 1]} : vector<9x4x1x1xf32> to vector<1x4x1x1xf32>
    %58 = vector.shape_cast %57 : vector<1x4x1x1xf32> to vector<4x1x1xf32>
    %59 = vector.broadcast %58 : vector<4x1x1xf32> to vector<4x18x18xf32>
    %60 = arith.mulf %56, %59 : vector<4x18x18xf32>
    %61 = arith.addf %55, %60 : vector<4x18x18xf32>
    %62 = vector.shape_cast %61 : vector<4x18x18xf32> to vector<2x2x18x18xf32>
    %c0_9 = arith.constant 0 : index
    %c0_10 = arith.constant 0 : index
    %c0_11 = arith.constant 0 : index
    %c0_12 = arith.constant 0 : index
    %63 = vector.load %arg2[%c0_9, %c0_10, %c0_11, %c0_12] : memref<2x2x18x18xf32, #tpu.memory_space<vmem>>, vector<2x2x18x18xf32>
    tpu.vector_store %arg2[%c0_9, %c0_10, %c0_11, %c0_12], %62 {strides = array<i32>} : memref<2x2x18x18xf32, #tpu.memory_space<vmem>>, vector<2x2x18x18xf32>,
    return
  }
}

</mosaic_0001>

<llo_original>
// kernel: tpu_custom_call.1
$region0: #{tpu_custom_call.1}
  #allocation0 [shape = 'u32[]', space=smem, size = 0x4, offset = 0x4, fixed_abs, tag = 'smem constant byte address 0x4 - core index']
  #allocation1 [shape = 'u32[72,128]{1,0:T(1,128)}', space=vmem, size = 0x9000, scoped, tag = 'internal scratch']
  %s0 = inlined_call_operand.hbm [shape: f32[2,2,16,16], index: 0, kind: input, shape index: {}]
  %s1 = inlined_call_operand.vmem [shape: f32[9,4,1,1], index: 1, kind: input, shape index: {}]
  %s2 = inlined_call_operand.vmem [shape: f32[2,2,18,18], index: 2, kind: output, shape index: {}]
  %s3 = sld [smem:[#allocation0]]
  $region22: #{tpu_custom_call.1} parent=0
    _
  %s5 = ssub.s32 1, %s3
  %s6 = scalar_select 0, %s5, %s3
  $region1: #{tpu_custom_call.1} parent=0
    #allocation2 [shape = 'u8[32768]{0}', space=vmem, size = 0x8000, scoped, tag = 'input window, operand 0, single buffered']
    #allocation3 [shape = 's32[1]{0}', space=sflag, size = 0x4, scoped, tag = 'scoped memory for tpu_custom_call.1']
    %7 = vsyncpa [#allocation3], 0
    // Predicated region
    $region2: #{tpu_custom_call.1} parent=1 // pred_check
      _
    $region3: #{tpu_custom_call.1} parent=1 // pred_check_branch
      %9 = sbr.rel (0) target = $region5
    $region4: #{tpu_custom_call.1} parent=1 // pred_region
      %11 = vsyncadd [#allocation3], 0
      %s12 = sshll.u32 %s0, 4
      %s13 = int_to_ptr.hbm [resolvable:$true] %s12
      %s14 = sshll.u32 [#allocation2], 4
      %s15 = int_to_ptr.vmem [resolvable:$true] %s14
      %20 = dma.hbm_to_vmem [thread:$0]  %s13, 1024, %s15, [#allocation3], 128, 128, 8
    $region5: #{tpu_custom_call.1} parent=1 // pred_fallthru
      _
    // Predicated region
    $region6: #{tpu_custom_call.1} parent=1 // pred_check
      _
    $region7: #{tpu_custom_call.1} parent=1 // pred_check_branch
      %22 = sbr.rel (0) target = $region9
    $region8: #{tpu_custom_call.1} parent=1 // pred_region
      _
    $region9: #{tpu_custom_call.1} parent=1 // pred_fallthru
      _
    // Predicated region
    $region10: #{tpu_custom_call.1} parent=1 // pred_check
      _
    $region11: #{tpu_custom_call.1} parent=1 // pred_check_branch
      %24 = sbr.rel (0) target = $region13
    $region12: #{tpu_custom_call.1} parent=1 // pred_region
      %26 = dma.done [#allocation3], 1024
    $region13: #{tpu_custom_call.1} parent=1 // pred_fallthru
      _
    %v27 = vld [vmem:[#allocation2] sm:$0xff]
    %v28 = vld [vmem:[#allocation2 + $0x8] sm:$0xff]
    %v29 = vld [vmem:[#allocation2 + $0x10] sm:$0xff]
    %v30 = vld [vmem:[#allocation2 + $0x18] sm:$0xff]
    %v31 = vld [vmem:[#allocation2 + $0x20] sm:$0xff]
    %v32 = vld [vmem:[#allocation2 + $0x28] sm:$0xff]
    %v33 = vld [vmem:[#allocation2 + $0x30] sm:$0xff]
    %v34 = vld [vmem:[#allocation2 + $0x38] sm:$0xff]
    %vm43 = vcmask 1041408
    %v44 = vrot.slane %v27, 6
    %v45 = vrot.slane %v28, 6
    %v46 = vsel %vm43, %v44, %v45
    %v47 = vrot.slane %v29, 6
    %v48 = vrot.slane %v30, 6
    %v49 = vsel %vm43, %v47, %v48
    %v50 = vrot.slane %v31, 6
    %v51 = vrot.slane %v32, 6
    %v52 = vsel %vm43, %v50, %v51
    %v53 = vrot.slane %v33, 6
    %v54 = vrot.slane %v34, 6
    %v55 = vsel %vm43, %v53, %v54
    %v64 = vsel %vm43, 0.0, %v44
    %v65 = vsel %vm43, 0.0, %v47
    %v66 = vsel %vm43, 0.0, %v50
    %v67 = vsel %vm43, 0.0, %v53
    %v68 = vsel %vm43, %v45, 0.0
    %v69 = vsel %vm43, %v48, 0.0
    %v70 = vsel %vm43, %v51, 0.0
    %v71 = vsel %vm43, %v54, 0.0
    %80 = vrot.lane.b32.xlu0 %v64, 2
    %v81 = vpop.permute.xlu0 %80
    %82 = vrot.lane.b32.xlu0 %v46, 2
    %v83 = vpop.permute.xlu0 %82
    %84 = vrot.lane.b32.xlu0 %v68, 2
    %v85 = vpop.permute.xlu0 %84
    %86 = vrot.lane.b32.xlu0 %v65, 2
    %v87 = vpop.permute.xlu0 %86
    %88 = vrot.lane.b32.xlu0 %v49, 2
    %v89 = vpop.permute.xlu0 %88
    %90 = vrot.lane.b32.xlu0 %v69, 2
    %v91 = vpop.permute.xlu0 %90
    %92 = vrot.lane.b32.xlu0 %v66, 2
    %v93 = vpop.permute.xlu0 %92
    %94 = vrot.lane.b32.xlu0 %v52, 2
    %v95 = vpop.permute.xlu0 %94
    %96 = vrot.lane.b32.xlu0 %v70, 2
    %v97 = vpop.permute.xlu0 %96
    %98 = vrot.lane.b32.xlu0 %v67, 2
    %v99 = vpop.permute.xlu0 %98
    %100 = vrot.lane.b32.xlu0 %v55, 2
    %v101 = vpop.permute.xlu0 %100
    %102 = vrot.lane.b32.xlu0 %v71, 2
    %v103 = vpop.permute.xlu0 %102
    %vm116 = vcmask 15360
    %v117 = vsel %vm116, 0.0, %v81
    %v118 = vsel %vm116, 0.0, %v83
    %v119 = vsel %vm116, 0.0, %v85
    %v120 = vsel %vm116, 0.0, %v87
    %v121 = vsel %vm116, 0.0, %v89
    %v122 = vsel %vm116, 0.0, %v91
    %v123 = vsel %vm116, 0.0, %v93
    %v124 = vsel %vm116, 0.0, %v95
    %v125 = vsel %vm116, 0.0, %v97
    %v126 = vsel %vm116, 0.0, %v99
    %v127 = vsel %vm116, 0.0, %v101
    %v128 = vsel %vm116, 0.0, %v103
    %vm129 = vcmask 146432
    %v130 = vsel %vm129, %v117, 0.0
    %v131 = vsel %vm129, %v118, 0.0
    %v132 = vsel %vm129, %v119, 0.0
    %v133 = vsel %vm129, %v120, 0.0
    %v134 = vsel %vm129, %v121, 0.0
    %v135 = vsel %vm129, %v122, 0.0
    %v136 = vsel %vm129, %v123, 0.0
    %v137 = vsel %vm129, %v124, 0.0
    %v138 = vsel %vm129, %v125, 0.0
    %v139 = vsel %vm129, %v126, 0.0
    %v140 = vsel %vm129, %v127, 0.0
    %v141 = vsel %vm129, %v128, 0.0
    %v142 = vld [vmem:[%s1] sm:$0x1]
    %v143 = vld [vmem:[%s1 + $0x1] sm:$0x1]
    %v144 = vld [vmem:[%s1 + $0x2] sm:$0x1]
    %v145 = vld [vmem:[%s1 + $0x3] sm:$0x1]
    %v146 = vld [vmem:[%s1 + $0x4] sm:$0x1]
    %v147 = vld [vmem:[%s1 + $0x5] sm:$0x1]
    %v148 = vld [vmem:[%s1 + $0x6] sm:$0x1]
    %v149 = vld [vmem:[%s1 + $0x7] sm:$0x1]
    %v150 = vld [vmem:[%s1 + $0x8] sm:$0x1]
    %v151 = vld [vmem:[%s1 + $0x9] sm:$0x1]
    %v152 = vld [vmem:[%s1 + $0xa] sm:$0x1]
    %v153 = vld [vmem:[%s1 + $0xb] sm:$0x1]
    %v154 = vld [vmem:[%s1 + $0xc] sm:$0x1]
    %v155 = vld [vmem:[%s1 + $0xd] sm:$0x1]
    %v156 = vld [vmem:[%s1 + $0xe] sm:$0x1]
    %v157 = vld [vmem:[%s1 + $0xf] sm:$0x1]
    %v158 = vld [vmem:[%s1 + $0x10] sm:$0x1]
    %v159 = vld [vmem:[%s1 + $0x11] sm:$0x1]
    %v160 = vld [vmem:[%s1 + $0x12] sm:$0x1]
    %v161 = vld [vmem:[%s1 + $0x13] sm:$0x1]
    %v162 = vld [vmem:[%s1 + $0x14] sm:$0x1]
    %v163 = vld [vmem:[%s1 + $0x15] sm:$0x1]
    %v164 = vld [vmem:[%s1 + $0x16] sm:$0x1]
    %v165 = vld [vmem:[%s1 + $0x17] sm:$0x1]
    %v166 = vld [vmem:[%s1 + $0x18] sm:$0x1]
    %v167 = vld [vmem:[%s1 + $0x19] sm:$0x1]
    %v168 = vld [vmem:[%s1 + $0x1a] sm:$0x1]
    %v169 = vld [vmem:[%s1 + $0x1b] sm:$0x1]
    %v170 = vld [vmem:[%s1 + $0x1c] sm:$0x1]
    %v171 = vld [vmem:[%s1 + $0x1d] sm:$0x1]
    %v172 = vld [vmem:[%s1 + $0x1e] sm:$0x1]
    %v173 = vld [vmem:[%s1 + $0x1f] sm:$0x1]
    %v174 = vld [vmem:[%s1 + $0x20] sm:$0x1]
    %v175 = vld [vmem:[%s1 + $0x21] sm:$0x1]
    %v176 = vld [vmem:[%s1 + $0x22] sm:$0x1]
    %v177 = vld [vmem:[%s1 + $0x23] sm:$0x1]
    %v182 = vperm.slane %v142, 0
    %v183 = vperm.slane %v143, 0
    %v184 = vperm.slane %v144, 0
    %v185 = vperm.slane %v145, 0
    %186 = vset.pattern.permute.xlu0 0
    %187 = vperm.xlu0 %186, %v182
    %v188 = vpop.permute.xlu0 %187
    %190 = vset.pattern.permute.xlu0 0
    %191 = vperm.xlu0 %190, %v183
    %v192 = vpop.permute.xlu0 %191
    %194 = vset.pattern.permute.xlu0 0
    %195 = vperm.xlu0 %194, %v184
    %v196 = vpop.permute.xlu0 %195
    %198 = vset.pattern.permute.xlu0 0
    %199 = vperm.xlu0 %198, %v185
    %v200 = vpop.permute.xlu0 %199
    %v202 = vmul.f32 %v130, %v188
    %v203 = vmul.f32 %v131, %v188
    %v204 = vmul.f32 %v132, %v188
    %v205 = vmul.f32 %v133, %v192
    %v206 = vmul.f32 %v134, %v192
    %v207 = vmul.f32 %v135, %v192
    %v208 = vmul.f32 %v136, %v196
    %v209 = vmul.f32 %v137, %v196
    %v210 = vmul.f32 %v138, %v196
    %v211 = vmul.f32 %v139, %v200
    %v212 = vmul.f32 %v140, %v200
    %v213 = vmul.f32 %v141, %v200
    %v214 = vadd.f32 %v202, 0.0
    %v215 = vadd.f32 %v203, 0.0
    %v216 = vadd.f32 %v204, 0.0
    %v217 = vadd.f32 %v205, 0.0
    %v218 = vadd.f32 %v206, 0.0
    %v219 = vadd.f32 %v207, 0.0
    %v220 = vadd.f32 %v208, 0.0
    %v221 = vadd.f32 %v209, 0.0
    %v222 = vadd.f32 %v210, 0.0
    %v223 = vadd.f32 %v211, 0.0
    %v224 = vadd.f32 %v212, 0.0
    %v225 = vadd.f32 %v213, 0.0
    %v230 = vperm.slane %v146, 0
    %v231 = vperm.slane %v147, 0
    %v232 = vperm.slane %v148, 0
    %v233 = vperm.slane %v149, 0
    %234 = vset.pattern.permute.xlu0 0
    %235 = vperm.xlu0 %234, %v230
    %v236 = vpop.permute.xlu0 %235
    %238 = vset.pattern.permute.xlu0 0
    %239 = vperm.xlu0 %238, %v231
    %v240 = vpop.permute.xlu0 %239
    %242 = vset.pattern.permute.xlu0 0
    %243 = vperm.xlu0 %242, %v232
    %v244 = vpop.permute.xlu0 %243
    %246 = vset.pattern.permute.xlu0 0
    %247 = vperm.xlu0 %246, %v233
    %v248 = vpop.permute.xlu0 %247
    %v250 = vmul.f32 %v130, %v236
    %v251 = vmul.f32 %v131, %v236
    %v252 = vmul.f32 %v132, %v236
    %v253 = vmul.f32 %v133, %v240
    %v254 = vmul.f32 %v134, %v240
    %v255 = vmul.f32 %v135, %v240
    %v256 = vmul.f32 %v136, %v244
    %v257 = vmul.f32 %v137, %v244
    %v258 = vmul.f32 %v138, %v244
    %v259 = vmul.f32 %v139, %v248
    %v260 = vmul.f32 %v140, %v248
    %v261 = vmul.f32 %v141, %v248
    %274 = vrot.lane.b32.xlu0 %v250, 127
    %v275 = vpop.permute.xlu0 %274
    %276 = vrot.lane.b32.xlu0 %v251, 127
    %v277 = vpop.permute.xlu0 %276
    %278 = vrot.lane.b32.xlu0 %v252, 127
    %v279 = vpop.permute.xlu0 %278
    %280 = vrot.lane.b32.xlu0 %v253, 127
    %v281 = vpop.permute.xlu0 %280
    %282 = vrot.lane.b32.xlu0 %v254, 127
    %v283 = vpop.permute.xlu0 %282
    %284 = vrot.lane.b32.xlu0 %v255, 127
    %v285 = vpop.permute.xlu0 %284
    %286 = vrot.lane.b32.xlu0 %v256, 127
    %v287 = vpop.permute.xlu0 %286
    %288 = vrot.lane.b32.xlu0 %v257, 127
    %v289 = vpop.permute.xlu0 %288
    %290 = vrot.lane.b32.xlu0 %v258, 127
    %v291 = vpop.permute.xlu0 %290
    %292 = vrot.lane.b32.xlu0 %v259, 127
    %v293 = vpop.permute.xlu0 %292
    %294 = vrot.lane.b32.xlu0 %v260, 127
    %v295 = vpop.permute.xlu0 %294
    %296 = vrot.lane.b32.xlu0 %v261, 127
    %v297 = vpop.permute.xlu0 %296
    %v310 = vadd.f32 %v214, %v275
    %v311 = vadd.f32 %v215, %v277
    %v312 = vadd.f32 %v216, %v279
    %v313 = vadd.f32 %v217, %v281
    %v314 = vadd.f32 %v218, %v283
    %v315 = vadd.f32 %v219, %v285
    %v316 = vadd.f32 %v220, %v287
    %v317 = vadd.f32 %v221, %v289
    %v318 = vadd.f32 %v222, %v291
    %v319 = vadd.f32 %v223, %v293
    %v320 = vadd.f32 %v224, %v295
    %v321 = vadd.f32 %v225, %v297
    %v326 = vperm.slane %v150, 0
    %v327 = vperm.slane %v151, 0
    %v328 = vperm.slane %v152, 0
    %v329 = vperm.slane %v153, 0
    %330 = vset.pattern.permute.xlu0 0
    %331 = vperm.xlu0 %330, %v326
    %v332 = vpop.permute.xlu0 %331
    %334 = vset.pattern.permute.xlu0 0
    %335 = vperm.xlu0 %334, %v327
    %v336 = vpop.permute.xlu0 %335
    %338 = vset.pattern.permute.xlu0 0
    %339 = vperm.xlu0 %338, %v328
    %v340 = vpop.permute.xlu0 %339
    %342 = vset.pattern.permute.xlu0 0
    %343 = vperm.xlu0 %342, %v329
    %v344 = vpop.permute.xlu0 %343
    %v346 = vmul.f32 %v130, %v332
    %v347 = vmul.f32 %v131, %v332
    %v348 = vmul.f32 %v132, %v332
    %v349 = vmul.f32 %v133, %v336
    %v350 = vmul.f32 %v134, %v336
    %v351 = vmul.f32 %v135, %v336
    %v352 = vmul.f32 %v136, %v340
    %v353 = vmul.f32 %v137, %v340
    %v354 = vmul.f32 %v138, %v340
    %v355 = vmul.f32 %v139, %v344
    %v356 = vmul.f32 %v140, %v344
    %v357 = vmul.f32 %v141, %v344
    %370 = vrot.lane.b32.xlu0 %v346, 126
    %v371 = vpop.permute.xlu0 %370
    %372 = vrot.lane.b32.xlu0 %v347, 126
    %v373 = vpop.permute.xlu0 %372
    %374 = vrot.lane.b32.xlu0 %v348, 126
    %v375 = vpop.permute.xlu0 %374
    %376 = vrot.lane.b32.xlu0 %v349, 126
    %v377 = vpop.permute.xlu0 %376
    %378 = vrot.lane.b32.xlu0 %v350, 126
    %v379 = vpop.permute.xlu0 %378
    %380 = vrot.lane.b32.xlu0 %v351, 126
    %v381 = vpop.permute.xlu0 %380
    %382 = vrot.lane.b32.xlu0 %v352, 126
    %v383 = vpop.permute.xlu0 %382
    %384 = vrot.lane.b32.xlu0 %v353, 126
    %v385 = vpop.permute.xlu0 %384
    %386 = vrot.lane.b32.xlu0 %v354, 126
    %v387 = vpop.permute.xlu0 %386
    %388 = vrot.lane.b32.xlu0 %v355, 126
    %v389 = vpop.permute.xlu0 %388
    %390 = vrot.lane.b32.xlu0 %v356, 126
    %v391 = vpop.permute.xlu0 %390
    %392 = vrot.lane.b32.xlu0 %v357, 126
    %v393 = vpop.permute.xlu0 %392
    %v406 = vadd.f32 %v310, %v371
    %v407 = vadd.f32 %v311, %v373
    %v408 = vadd.f32 %v312, %v375
    %v409 = vadd.f32 %v313, %v377
    %v410 = vadd.f32 %v314, %v379
    %v411 = vadd.f32 %v315, %v381
    %v412 = vadd.f32 %v316, %v383
    %v413 = vadd.f32 %v317, %v385
    %v414 = vadd.f32 %v318, %v387
    %v415 = vadd.f32 %v319, %v389
    %v416 = vadd.f32 %v320, %v391
    %v417 = vadd.f32 %v321, %v393
    %v422 = vperm.slane %v154, 0
    %v423 = vperm.slane %v155, 0
    %v424 = vperm.slane %v156, 0
    %v425 = vperm.slane %v157, 0
    %426 = vset.pattern.permute.xlu0 0
    %427 = vperm.xlu0 %426, %v422
    %v428 = vpop.permute.xlu0 %427
    %430 = vset.pattern.permute.xlu0 0
    %431 = vperm.xlu0 %430, %v423
    %v432 = vpop.permute.xlu0 %431
    %434 = vset.pattern.permute.xlu0 0
    %435 = vperm.xlu0 %434, %v424
    %v436 = vpop.permute.xlu0 %435
    %438 = vset.pattern.permute.xlu0 0
    %439 = vperm.xlu0 %438, %v425
    %v440 = vpop.permute.xlu0 %439
    %v442 = vmul.f32 %v130, %v428
    %v443 = vmul.f32 %v131, %v428
    %v444 = vmul.f32 %v132, %v428
    %v445 = vmul.f32 %v133, %v432
    %v446 = vmul.f32 %v134, %v432
    %v447 = vmul.f32 %v135, %v432
    %v448 = vmul.f32 %v136, %v436
    %v449 = vmul.f32 %v137, %v436
    %v450 = vmul.f32 %v138, %v436
    %v451 = vmul.f32 %v139, %v440
    %v452 = vmul.f32 %v140, %v440
    %v453 = vmul.f32 %v141, %v440
    %vm466 = vcmask 1046528
    %v467 = vrot.slane %v442, 1
    %v468 = vrot.slane %v443, 1
    %v469 = vsel %vm466, %v467, %v468
    %v470 = vrot.slane %v444, 1
    %v471 = vsel %vm466, %v468, %v470
    %v472 = vrot.slane %v445, 1
    %v473 = vrot.slane %v446, 1
    %v474 = vsel %vm466, %v472, %v473
    %v475 = vrot.slane %v447, 1
    %v476 = vsel %vm466, %v473, %v475
    %v477 = vrot.slane %v448, 1
    %v478 = vrot.slane %v449, 1
    %v479 = vsel %vm466, %v477, %v478
    %v480 = vrot.slane %v450, 1
    %v481 = vsel %vm466, %v478, %v480
    %v482 = vrot.slane %v451, 1
    %v483 = vrot.slane %v452, 1
    %v484 = vsel %vm466, %v482, %v483
    %v485 = vrot.slane %v453, 1
    %v486 = vsel %vm466, %v483, %v485
    %v499 = vadd.f32 %v406, %v469
    %v500 = vadd.f32 %v407, %v471
    %v501 = vadd.f32 %v408, %v470
    %v502 = vadd.f32 %v409, %v474
    %v503 = vadd.f32 %v410, %v476
    %v504 = vadd.f32 %v411, %v475
    %v505 = vadd.f32 %v412, %v479
    %v506 = vadd.f32 %v413, %v481
    %v507 = vadd.f32 %v414, %v480
    %v508 = vadd.f32 %v415, %v484
    %v509 = vadd.f32 %v416, %v486
    %v510 = vadd.f32 %v417, %v485
    %v515 = vperm.slane %v158, 0
    %v516 = vperm.slane %v159, 0
    %v517 = vperm.slane %v160, 0
    %v518 = vperm.slane %v161, 0
    %519 = vset.pattern.permute.xlu0 0
    %520 = vperm.xlu0 %519, %v515
    %v521 = vpop.permute.xlu0 %520
    %523 = vset.pattern.permute.xlu0 0
    %524 = vperm.xlu0 %523, %v516
    %v525 = vpop.permute.xlu0 %524
    %527 = vset.pattern.permute.xlu0 0
    %528 = vperm.xlu0 %527, %v517
    %v529 = vpop.permute.xlu0 %528
    %531 = vset.pattern.permute.xlu0 0
    %532 = vperm.xlu0 %531, %v518
    %v533 = vpop.permute.xlu0 %532
    %v535 = vmul.f32 %v130, %v521
    %v536 = vmul.f32 %v131, %v521
    %v537 = vmul.f32 %v132, %v521
    %v538 = vmul.f32 %v133, %v525
    %v539 = vmul.f32 %v134, %v525
    %v540 = vmul.f32 %v135, %v525
    %v541 = vmul.f32 %v136, %v529
    %v542 = vmul.f32 %v137, %v529
    %v543 = vmul.f32 %v138, %v529
    %v544 = vmul.f32 %v139, %v533
    %v545 = vmul.f32 %v140, %v533
    %v546 = vmul.f32 %v141, %v533
    %v559 = vrot.slane %v535, 1
    %v560 = vrot.slane %v536, 1
    %v561 = vsel %vm466, %v559, %v560
    %v562 = vrot.slane %v537, 1
    %v563 = vsel %vm466, %v560, %v562
    %v564 = vrot.slane %v538, 1
    %v565 = vrot.slane %v539, 1
    %v566 = vsel %vm466, %v564, %v565
    %v567 = vrot.slane %v540, 1
    %v568 = vsel %vm466, %v565, %v567
    %v569 = vrot.slane %v541, 1
    %v570 = vrot.slane %v542, 1
    %v571 = vsel %vm466, %v569, %v570
    %v572 = vrot.slane %v543, 1
    %v573 = vsel %vm466, %v570, %v572
    %v574 = vrot.slane %v544, 1
    %v575 = vrot.slane %v545, 1
    %v576 = vsel %vm466, %v574, %v575
    %v577 = vrot.slane %v546, 1
    %v578 = vsel %vm466, %v575, %v577
    %579 = vrot.lane.b32.xlu0 %v561, 127
    %v580 = vpop.permute.xlu0 %579
    %581 = vrot.lane.b32.xlu0 %v563, 127
    %v582 = vpop.permute.xlu0 %581
    %583 = vrot.lane.b32.xlu0 %v562, 127
    %v584 = vpop.permute.xlu0 %583
    %585 = vrot.lane.b32.xlu0 %v566, 127
    %v586 = vpop.permute.xlu0 %585
    %587 = vrot.lane.b32.xlu0 %v568, 127
    %v588 = vpop.permute.xlu0 %587
    %589 = vrot.lane.b32.xlu0 %v567, 127
    %v590 = vpop.permute.xlu0 %589
    %591 = vrot.lane.b32.xlu0 %v571, 127
    %v592 = vpop.permute.xlu0 %591
    %593 = vrot.lane.b32.xlu0 %v573, 127
    %v594 = vpop.permute.xlu0 %593
    %595 = vrot.lane.b32.xlu0 %v572, 127
    %v596 = vpop.permute.xlu0 %595
    %597 = vrot.lane.b32.xlu0 %v576, 127
    %v598 = vpop.permute.xlu0 %597
    %599 = vrot.lane.b32.xlu0 %v578, 127
    %v600 = vpop.permute.xlu0 %599
    %601 = vrot.lane.b32.xlu0 %v577, 127
    %v602 = vpop.permute.xlu0 %601
    %v615 = vadd.f32 %v499, %v580
    %v616 = vadd.f32 %v500, %v582
    %v617 = vadd.f32 %v501, %v584
    %v618 = vadd.f32 %v502, %v586
    %v619 = vadd.f32 %v503, %v588
    %v620 = vadd.f32 %v504, %v590
    %v621 = vadd.f32 %v505, %v592
    %v622 = vadd.f32 %v506, %v594
    %v623 = vadd.f32 %v507, %v596
    %v624 = vadd.f32 %v508, %v598
    %v625 = vadd.f32 %v509, %v600
    %v626 = vadd.f32 %v510, %v602
    %v631 = vperm.slane %v162, 0
    %v632 = vperm.slane %v163, 0
    %v633 = vperm.slane %v164, 0
    %v634 = vperm.slane %v165, 0
    %635 = vset.pattern.permute.xlu0 0
    %636 = vperm.xlu0 %635, %v631
    %v637 = vpop.permute.xlu0 %636
    %639 = vset.pattern.permute.xlu0 0
    %640 = vperm.xlu0 %639, %v632
    %v641 = vpop.permute.xlu0 %640
    %643 = vset.pattern.permute.xlu0 0
    %644 = vperm.xlu0 %643, %v633
    %v645 = vpop.permute.xlu0 %644
    %647 = vset.pattern.permute.xlu0 0
    %648 = vperm.xlu0 %647, %v634
    %v649 = vpop.permute.xlu0 %648
    %v651 = vmul.f32 %v130, %v637
    %v652 = vmul.f32 %v131, %v637
    %v653 = vmul.f32 %v132, %v637
    %v654 = vmul.f32 %v133, %v641
    %v655 = vmul.f32 %v134, %v641
    %v656 = vmul.f32 %v135, %v641
    %v657 = vmul.f32 %v136, %v645
    %v658 = vmul.f32 %v137, %v645
    %v659 = vmul.f32 %v138, %v645
    %v660 = vmul.f32 %v139, %v649
    %v661 = vmul.f32 %v140, %v649
    %v662 = vmul.f32 %v141, %v649
    %v675 = vrot.slane %v651, 1
    %v676 = vrot.slane %v652, 1
    %v677 = vsel %vm466, %v675, %v676
    %v678 = vrot.slane %v653, 1
    %v679 = vsel %vm466, %v676, %v678
    %v680 = vrot.slane %v654, 1
    %v681 = vrot.slane %v655, 1
    %v682 = vsel %vm466, %v680, %v681
    %v683 = vrot.slane %v656, 1
    %v684 = vsel %vm466, %v681, %v683
    %v685 = vrot.slane %v657, 1
    %v686 = vrot.slane %v658, 1
    %v687 = vsel %vm466, %v685, %v686
    %v688 = vrot.slane %v659, 1
    %v689 = vsel %vm466, %v686, %v688
    %v690 = vrot.slane %v660, 1
    %v691 = vrot.slane %v661, 1
    %v692 = vsel %vm466, %v690, %v691
    %v693 = vrot.slane %v662, 1
    %v694 = vsel %vm466, %v691, %v693
    %695 = vrot.lane.b32.xlu0 %v677, 126
    %v696 = vpop.permute.xlu0 %695
    %697 = vrot.lane.b32.xlu0 %v679, 126
    %v698 = vpop.permute.xlu0 %697
    %699 = vrot.lane.b32.xlu0 %v678, 126
    %v700 = vpop.permute.xlu0 %699
    %701 = vrot.lane.b32.xlu0 %v682, 126
    %v702 = vpop.permute.xlu0 %701
    %703 = vrot.lane.b32.xlu0 %v684, 126
    %v704 = vpop.permute.xlu0 %703
    %705 = vrot.lane.b32.xlu0 %v683, 126
    %v706 = vpop.permute.xlu0 %705
    %707 = vrot.lane.b32.xlu0 %v687, 126
    %v708 = vpop.permute.xlu0 %707
    %709 = vrot.lane.b32.xlu0 %v689, 126
    %v710 = vpop.permute.xlu0 %709
    %711 = vrot.lane.b32.xlu0 %v688, 126
    %v712 = vpop.permute.xlu0 %711
    %713 = vrot.lane.b32.xlu0 %v692, 126
    %v714 = vpop.permute.xlu0 %713
    %715 = vrot.lane.b32.xlu0 %v694, 126
    %v716 = vpop.permute.xlu0 %715
    %717 = vrot.lane.b32.xlu0 %v693, 126
    %v718 = vpop.permute.xlu0 %717
    %v731 = vadd.f32 %v615, %v696
    %v732 = vadd.f32 %v616, %v698
    %v733 = vadd.f32 %v617, %v700
    %v734 = vadd.f32 %v618, %v702
    %v735 = vadd.f32 %v619, %v704
    %v736 = vadd.f32 %v620, %v706
    %v737 = vadd.f32 %v621, %v708
    %v738 = vadd.f32 %v622, %v710
    %v739 = vadd.f32 %v623, %v712
    %v740 = vadd.f32 %v624, %v714
    %v741 = vadd.f32 %v625, %v716
    %v742 = vadd.f32 %v626, %v718
    %v747 = vperm.slane %v166, 0
    %v748 = vperm.slane %v167, 0
    %v749 = vperm.slane %v168, 0
    %v750 = vperm.slane %v169, 0
    %751 = vset.pattern.permute.xlu0 0
    %752 = vperm.xlu0 %751, %v747
    %v753 = vpop.permute.xlu0 %752
    %755 = vset.pattern.permute.xlu0 0
    %756 = vperm.xlu0 %755, %v748
    %v757 = vpop.permute.xlu0 %756
    %759 = vset.pattern.permute.xlu0 0
    %760 = vperm.xlu0 %759, %v749
    %v761 = vpop.permute.xlu0 %760
    %763 = vset.pattern.permute.xlu0 0
    %764 = vperm.xlu0 %763, %v750
    %v765 = vpop.permute.xlu0 %764
    %v767 = vmul.f32 %v130, %v753
    %v768 = vmul.f32 %v131, %v753
    %v769 = vmul.f32 %v132, %v753
    %v770 = vmul.f32 %v133, %v757
    %v771 = vmul.f32 %v134, %v757
    %v772 = vmul.f32 %v135, %v757
    %v773 = vmul.f32 %v136, %v761
    %v774 = vmul.f32 %v137, %v761
    %v775 = vmul.f32 %v138, %v761
    %v776 = vmul.f32 %v139, %v765
    %v777 = vmul.f32 %v140, %v765
    %v778 = vmul.f32 %v141, %v765
    %vm791 = vcmask 1045504
    %v792 = vrot.slane %v767, 2
    %v793 = vrot.slane %v768, 2
    %v794 = vsel %vm791, %v792, %v793
    %v795 = vrot.slane %v769, 2
    %v796 = vsel %vm791, %v793, %v795
    %v797 = vrot.slane %v770, 2
    %v798 = vrot.slane %v771, 2
    %v799 = vsel %vm791, %v797, %v798
    %v800 = vrot.slane %v772, 2
    %v801 = vsel %vm791, %v798, %v800
    %v802 = vrot.slane %v773, 2
    %v803 = vrot.slane %v774, 2
    %v804 = vsel %vm791, %v802, %v803
    %v805 = vrot.slane %v775, 2
    %v806 = vsel %vm791, %v803, %v805
    %v807 = vrot.slane %v776, 2
    %v808 = vrot.slane %v777, 2
    %v809 = vsel %vm791, %v807, %v808
    %v810 = vrot.slane %v778, 2
    %v811 = vsel %vm791, %v808, %v810
    %v824 = vadd.f32 %v731, %v794
    %v825 = vadd.f32 %v732, %v796
    %v826 = vadd.f32 %v733, %v795
    %v827 = vadd.f32 %v734, %v799
    %v828 = vadd.f32 %v735, %v801
    %v829 = vadd.f32 %v736, %v800
    %v830 = vadd.f32 %v737, %v804
    %v831 = vadd.f32 %v738, %v806
    %v832 = vadd.f32 %v739, %v805
    %v833 = vadd.f32 %v740, %v809
    %v834 = vadd.f32 %v741, %v811
    %v835 = vadd.f32 %v742, %v810
    %v840 = vperm.slane %v170, 0
    %v841 = vperm.slane %v171, 0
    %v842 = vperm.slane %v172, 0
    %v843 = vperm.slane %v173, 0
    %844 = vset.pattern.permute.xlu0 0
    %845 = vperm.xlu0 %844, %v840
    %v846 = vpop.permute.xlu0 %845
    %848 = vset.pattern.permute.xlu0 0
    %849 = vperm.xlu0 %848, %v841
    %v850 = vpop.permute.xlu0 %849
    %852 = vset.pattern.permute.xlu0 0
    %853 = vperm.xlu0 %852, %v842
    %v854 = vpop.permute.xlu0 %853
    %856 = vset.pattern.permute.xlu0 0
    %857 = vperm.xlu0 %856, %v843
    %v858 = vpop.permute.xlu0 %857
    %v860 = vmul.f32 %v130, %v846
    %v861 = vmul.f32 %v131, %v846
    %v862 = vmul.f32 %v132, %v846
    %v863 = vmul.f32 %v133, %v850
    %v864 = vmul.f32 %v134, %v850
    %v865 = vmul.f32 %v135, %v850
    %v866 = vmul.f32 %v136, %v854
    %v867 = vmul.f32 %v137, %v854
    %v868 = vmul.f32 %v138, %v854
    %v869 = vmul.f32 %v139, %v858
    %v870 = vmul.f32 %v140, %v858
    %v871 = vmul.f32 %v141, %v858
    %v884 = vrot.slane %v860, 2
    %v885 = vrot.slane %v861, 2
    %v886 = vsel %vm791, %v884, %v885
    %v887 = vrot.slane %v862, 2
    %v888 = vsel %vm791, %v885, %v887
    %v889 = vrot.slane %v863, 2
    %v890 = vrot.slane %v864, 2
    %v891 = vsel %vm791, %v889, %v890
    %v892 = vrot.slane %v865, 2
    %v893 = vsel %vm791, %v890, %v892
    %v894 = vrot.slane %v866, 2
    %v895 = vrot.slane %v867, 2
    %v896 = vsel %vm791, %v894, %v895
    %v897 = vrot.slane %v868, 2
    %v898 = vsel %vm791, %v895, %v897
    %v899 = vrot.slane %v869, 2
    %v900 = vrot.slane %v870, 2
    %v901 = vsel %vm791, %v899, %v900
    %v902 = vrot.slane %v871, 2
    %v903 = vsel %vm791, %v900, %v902
    %904 = vrot.lane.b32.xlu0 %v886, 127
    %v905 = vpop.permute.xlu0 %904
    %906 = vrot.lane.b32.xlu0 %v888, 127
    %v907 = vpop.permute.xlu0 %906
    %908 = vrot.lane.b32.xlu0 %v887, 127
    %v909 = vpop.permute.xlu0 %908
    %910 = vrot.lane.b32.xlu0 %v891, 127
    %v911 = vpop.permute.xlu0 %910
    %912 = vrot.lane.b32.xlu0 %v893, 127
    %v913 = vpop.permute.xlu0 %912
    %914 = vrot.lane.b32.xlu0 %v892, 127
    %v915 = vpop.permute.xlu0 %914
    %916 = vrot.lane.b32.xlu0 %v896, 127
    %v917 = vpop.permute.xlu0 %916
    %918 = vrot.lane.b32.xlu0 %v898, 127
    %v919 = vpop.permute.xlu0 %918
    %920 = vrot.lane.b32.xlu0 %v897, 127
    %v921 = vpop.permute.xlu0 %920
    %922 = vrot.lane.b32.xlu0 %v901, 127
    %v923 = vpop.permute.xlu0 %922
    %924 = vrot.lane.b32.xlu0 %v903, 127
    %v925 = vpop.permute.xlu0 %924
    %926 = vrot.lane.b32.xlu0 %v902, 127
    %v927 = vpop.permute.xlu0 %926
    %v940 = vadd.f32 %v824, %v905
    %v941 = vadd.f32 %v825, %v907
    %v942 = vadd.f32 %v826, %v909
    %v943 = vadd.f32 %v827, %v911
    %v944 = vadd.f32 %v828, %v913
    %v945 = vadd.f32 %v829, %v915
    %v946 = vadd.f32 %v830, %v917
    %v947 = vadd.f32 %v831, %v919
    %v948 = vadd.f32 %v832, %v921
    %v949 = vadd.f32 %v833, %v923
    %v950 = vadd.f32 %v834, %v925
    %v951 = vadd.f32 %v835, %v927
    %v956 = vperm.slane %v174, 0
    %v957 = vperm.slane %v175, 0
    %v958 = vperm.slane %v176, 0
    %v959 = vperm.slane %v177, 0
    %960 = vset.pattern.permute.xlu0 0
    %961 = vperm.xlu0 %960, %v956
    %v962 = vpop.permute.xlu0 %961
    %964 = vset.pattern.permute.xlu0 0
    %965 = vperm.xlu0 %964, %v957
    %v966 = vpop.permute.xlu0 %965
    %968 = vset.pattern.permute.xlu0 0
    %969 = vperm.xlu0 %968, %v958
    %v970 = vpop.permute.xlu0 %969
    %972 = vset.pattern.permute.xlu0 0
    %973 = vperm.xlu0 %972, %v959
    %v974 = vpop.permute.xlu0 %973
    %v976 = vmul.f32 %v130, %v962
    %v977 = vmul.f32 %v131, %v962
    %v978 = vmul.f32 %v132, %v962
    %v979 = vmul.f32 %v133, %v966
    %v980 = vmul.f32 %v134, %v966
    %v981 = vmul.f32 %v135, %v966
    %v982 = vmul.f32 %v136, %v970
    %v983 = vmul.f32 %v137, %v970
    %v984 = vmul.f32 %v138, %v970
    %v985 = vmul.f32 %v139, %v974
    %v986 = vmul.f32 %v140, %v974
    %v987 = vmul.f32 %v141, %v974
    %v1000 = vrot.slane %v976, 2
    %v1001 = vrot.slane %v977, 2
    %v1002 = vsel %vm791, %v1000, %v1001
    %v1003 = vrot.slane %v978, 2
    %v1004 = vsel %vm791, %v1001, %v1003
    %v1005 = vrot.slane %v979, 2
    %v1006 = vrot.slane %v980, 2
    %v1007 = vsel %vm791, %v1005, %v1006
    %v1008 = vrot.slane %v981, 2
    %v1009 = vsel %vm791, %v1006, %v1008
    %v1010 = vrot.slane %v982, 2
    %v1011 = vrot.slane %v983, 2
    %v1012 = vsel %vm791, %v1010, %v1011
    %v1013 = vrot.slane %v984, 2
    %v1014 = vsel %vm791, %v1011, %v1013
    %v1015 = vrot.slane %v985, 2
    %v1016 = vrot.slane %v986, 2
    %v1017 = vsel %vm791, %v1015, %v1016
    %v1018 = vrot.slane %v987, 2
    %v1019 = vsel %vm791, %v1016, %v1018
    %1020 = vrot.lane.b32.xlu0 %v1002, 126
    %v1021 = vpop.permute.xlu0 %1020
    %1022 = vrot.lane.b32.xlu0 %v1004, 126
    %v1023 = vpop.permute.xlu0 %1022
    %1024 = vrot.lane.b32.xlu0 %v1003, 126
    %v1025 = vpop.permute.xlu0 %1024
    %1026 = vrot.lane.b32.xlu0 %v1007, 126
    %v1027 = vpop.permute.xlu0 %1026
    %1028 = vrot.lane.b32.xlu0 %v1009, 126
    %v1029 = vpop.permute.xlu0 %1028
    %1030 = vrot.lane.b32.xlu0 %v1008, 126
    %v1031 = vpop.permute.xlu0 %1030
    %1032 = vrot.lane.b32.xlu0 %v1012, 126
    %v1033 = vpop.permute.xlu0 %1032
    %1034 = vrot.lane.b32.xlu0 %v1014, 126
    %v1035 = vpop.permute.xlu0 %1034
    %1036 = vrot.lane.b32.xlu0 %v1013, 126
    %v1037 = vpop.permute.xlu0 %1036
    %1038 = vrot.lane.b32.xlu0 %v1017, 126
    %v1039 = vpop.permute.xlu0 %1038
    %1040 = vrot.lane.b32.xlu0 %v1019, 126
    %v1041 = vpop.permute.xlu0 %1040
    %1042 = vrot.lane.b32.xlu0 %v1018, 126
    %v1043 = vpop.permute.xlu0 %1042
    %v1056 = vadd.f32 %v940, %v1021
    %v1057 = vadd.f32 %v941, %v1023
    %v1058 = vadd.f32 %v942, %v1025
    %v1059 = vadd.f32 %v943, %v1027
    %v1060 = vadd.f32 %v944, %v1029
    %v1061 = vadd.f32 %v945, %v1031
    %v1062 = vadd.f32 %v946, %v1033
    %v1063 = vadd.f32 %v947, %v1035
    %v1064 = vadd.f32 %v948, %v1037
    %v1065 = vadd.f32 %v949, %v1039
    %v1066 = vadd.f32 %v950, %v1041
    %v1067 = vadd.f32 %v951, %v1043
    %1068 = vst.msk [vmem:[%s2] sm:$0xff] %vm129, %v1056
    %1069 = vst.msk [vmem:[%s2 + $0x8] sm:$0xff] %vm129, %v1057
    %vm1070 = vcmask 140288
    %1071 = vst.msk [vmem:[%s2 + $0x10] sm:$0x3] %vm1070, %v1058
    %1072 = vst.msk [vmem:[%s2 + $0x18] sm:$0xff] %vm129, %v1059
    %1073 = vst.msk [vmem:[%s2 + $0x20] sm:$0xff] %vm129, %v1060
    %1074 = vst.msk [vmem:[%s2 + $0x28] sm:$0x3] %vm1070, %v1061
    %1075 = vst.msk [vmem:[%s2 + $0x30] sm:$0xff] %vm129, %v1062
    %1076 = vst.msk [vmem:[%s2 + $0x38] sm:$0xff] %vm129, %v1063
    %1077 = vst.msk [vmem:[%s2 + $0x40] sm:$0x3] %vm1070, %v1064
    %1078 = vst.msk [vmem:[%s2 + $0x48] sm:$0xff] %vm129, %v1065
    %1079 = vst.msk [vmem:[%s2 + $0x50] sm:$0xff] %vm129, %v1066
    %1080 = vst.msk [vmem:[%s2 + $0x58] sm:$0x3] %vm1070, %v1067
    // Predicated region
    $region14: #{tpu_custom_call.1} parent=1 // pred_check
      _
    $region15: #{tpu_custom_call.1} parent=1 // pred_check_branch
      %1082 = sbr.rel (0) target = $region17
    $region16: #{tpu_custom_call.1} parent=1 // pred_region
      _
    $region17: #{tpu_custom_call.1} parent=1 // pred_fallthru
      _
    // Predicated region
    $region18: #{tpu_custom_call.1} parent=1 // pred_check
      _
    $region19: #{tpu_custom_call.1} parent=1 // pred_check_branch
      %1084 = sbr.rel (0) target = $region21
    $region20: #{tpu_custom_call.1} parent=1 // pred_region
      _
    $region21: #{tpu_custom_call.1} parent=1 // pred_fallthru
      _
    %1085 = vsyncpa [#allocation3], 1

</llo_original>
